<compile_context>
chip_gen: v7x
topology: tpu7x:2x2x1
jax: 0.10.0
libtpu: 0.0.40
codegen_flags: <defaults>
</compile_context>

<pallas_src>
import jax
import jax.numpy as jnp
from jax import lax
from jax.experimental import pallas as pl
from jax.experimental.pallas import tpu as pltpu


def disc_decoder_kernel(max_len_ref, lens_ref, xg_ref, enc_ref, whh_ref,
                        out_ref, h_ref, c_ref):
    """Masked single-layer LSTM recurrence + per-group dot-product scores.

      max_len_ref : SMEM (n_blocks,)   int32  scalar-prefetch per-block max length
      lens_ref    : VMEM (rows, 1)     int32  per-option sequence lengths
      xg_ref      : VMEM (T, rows, 4H) bf16   precomputed x_t @ W_ih + b (token gather)
      enc_ref     : VMEM (GT, H)       f32    encoder output, one row per (b, r) group
      whh_ref     : VMEM (H, 4H)       bf16   recurrent weights (same block every step)
      out_ref     : VMEM (GT, O)       f32    scores
      h_ref/c_ref : VMEM (rows, H)     f32    LSTM state scratch
    """
    rows, H = h_ref.shape
    GT, O = out_ref.shape

    lens = lens_ref[...]                       # (rows, 1) int32
    whh = whh_ref[...]                         # (H, 4H)   bf16
    t_max = max_len_ref[pl.program_id(0)]      # skip timesteps past this block's longest seq

    h_ref[...] = jnp.zeros_like(h_ref)
    c_ref[...] = jnp.zeros_like(c_ref)

    @pl.loop(0, t_max)
    def _(t):
        h = h_ref[...]
        c = c_ref[...]
        # Input projection was hoisted out of the recurrence: only one K=H
        # matmul (bf16 operands, f32 accumulation) remains on the serial path.
        gates = (xg_ref[t].astype(jnp.float32)
                 + jnp.dot(h.astype(jnp.bfloat16), whh,
                           preferred_element_type=jnp.float32))      # (rows, 4H)
        # H is a multiple of 128, so the gate slices fall on lane boundaries.
        i_g = jax.nn.sigmoid(gates[:, 0 * H:1 * H])
        f_g = jax.nn.sigmoid(gates[:, 1 * H:2 * H])
        g_g = jnp.tanh(gates[:, 2 * H:3 * H])
        o_g = jax.nn.sigmoid(gates[:, 3 * H:4 * H])
        c_new = f_g * c + i_g * g_g
        h_new = o_g * jnp.tanh(c_new)
        # pack_padded_sequence semantics: state only advances while t < length.
        # Zero-length rows keep h == 0 -> score 0 (matches the scatter into a
        # zero tensor in the PyTorch code).
        valid = t < lens                                             # (rows, 1) bool
        h_ref[...] = jnp.where(valid, h_new, h)
        c_ref[...] = jnp.where(valid, c_new, c)

    # score[g, o] = <h[g*O + o], enc[g]>: encoder rows broadcast per option
    # inside the kernel (no O-fold replica is ever materialized in HBM).
    h3 = h_ref[...].reshape(GT, O, H)
    out_ref[...] = jnp.sum(h3 * enc_ref[...][:, None, :], axis=-1)


def discriminative_decoder(encoder_output, options, options_length, params,
                           *, groups_per_block=8):
    """encoder_output: (B, R, H) f32; options: (B, R, O, T) int; options_length: (B, R, O) int."""
    emb, w_ih, w_hh, bias = (params["embed"], params["w_ih"],
                             params["w_hh"], params["bias"])
    B, R, O, T = options.shape
    H = w_hh.shape[0]
    G = B * R                                   # number of (batch, round) groups

    # Hoisted embedding lookup + input projection + bias: one (V, 4H) gate table
    # gathered per token outside the kernel. bf16 halves the HBM->VMEM traffic;
    # the in-kernel accumulation stays f32.
    gate_table = (emb.astype(jnp.float32) @ w_ih.astype(jnp.float32)
                  + bias[None, :].astype(jnp.float32)).astype(jnp.bfloat16)   # (V, 4H)

    # Groups per grid block (sublane-aligned) and padding so the grid tiles
    # evenly; padded rows get length 0 => zero hidden state => score 0.
    GT = max(8, ((groups_per_block + 7) // 8) * 8)
    G_pad = ((G + GT - 1) // GT) * GT
    n_blocks = G_pad // GT
    rows = GT * O                                # option rows per grid block
    N_pad = G_pad * O

    tok = options.reshape(G * O, T).astype(jnp.int32)
    lens = options_length.reshape(G * O).astype(jnp.int32)
    enc = encoder_output.reshape(G, H).astype(jnp.float32)
    if G_pad != G:
        pad_r = (G_pad - G) * O
        tok = jnp.concatenate([tok, jnp.zeros((pad_r, T), jnp.int32)], axis=0)
        lens = jnp.concatenate([lens, jnp.zeros((pad_r,), jnp.int32)], axis=0)
        enc = jnp.concatenate([enc, jnp.zeros((G_pad - G, H), jnp.float32)], axis=0)

    # Per-token gate pre-activations, time-major so the kernel indexes step t on
    # the leading (untiled) axis:  xg[t, n, :] = embed(tok[n, t]) @ W_ih + b.
    xg = jnp.transpose(gate_table[tok], (1, 0, 2))                 # (T, N_pad, 4H) bf16
    lens_col = lens.reshape(N_pad, 1)
    # Scalar-prefetched per-block max length: each block skips dead timesteps.
    block_max_len = lens.reshape(n_blocks, rows).max(axis=1).astype(jnp.int32)

    grid_spec = pltpu.PrefetchScalarGridSpec(
        num_scalar_prefetch=1,
        grid=(n_blocks,),
        in_specs=[
            pl.BlockSpec((rows, 1), lambda i, ml: (i, 0)),            # lengths
            pl.BlockSpec((T, rows, 4 * H), lambda i, ml: (0, i, 0)),  # xg (pipelined)
            pl.BlockSpec((GT, H), lambda i, ml: (i, 0)),              # enc (no O-fold copy)
            pl.BlockSpec((H, 4 * H), lambda i, ml: (0, 0)),           # W_hh (VMEM resident)
        ],
        out_specs=pl.BlockSpec((GT, O), lambda i, ml: (i, 0)),
        scratch_shapes=[pltpu.VMEM((rows, H), jnp.float32),           # h
                        pltpu.VMEM((rows, H), jnp.float32)],          # c
    )

    cost = pl.CostEstimate(
        flops=2 * N_pad * T * H * 4 * H + 2 * N_pad * H,
        transcendentals=5 * N_pad * T * H,
        bytes_accessed=(N_pad * T * 4 * H * 2 + N_pad * 4 + G_pad * H * 4
                        + H * 4 * H * 2 + G_pad * O * 4),
    )

    scores = pl.pallas_call(
        disc_decoder_kernel,
        out_shape=jax.ShapeDtypeStruct((G_pad, O), jnp.float32),
        grid_spec=grid_spec,
        compiler_params=pltpu.CompilerParams(
            # blocks are independent -> shard across TensorCores where available
            dimension_semantics=("parallel",),
            # TODO(synk): re-derive GT / vmem_limit per generation (v7x has 64 MiB VMEM)
            vmem_limit_bytes=48 * 1024 * 1024),
        cost_estimate=cost,
    )(block_max_len, lens_col, xg, enc, w_hh.astype(jnp.bfloat16))

    return scores[:G].reshape(B, R, O)


def reference(encoder_output, options, options_length, params):
    """Pure-JAX fp32 reference with the module's semantics (for correctness)."""
    emb, wih, whh, b = (params["embed"], params["w_ih"],
                        params["w_hh"], params["bias"])
    B, R, O, T = options.shape
    H = whh.shape[0]
    N = B * R * O
    tok = options.reshape(N, T)
    lens = options_length.reshape(N)
    x = emb[tok]                                                    # (N, T, E)

    def step(carry, t):
        h, c = carry
        gates = x[:, t, :] @ wih + h @ whh + b
        i = jax.nn.sigmoid(gates[:, :H])
        f = jax.nn.sigmoid(gates[:, H:2 * H])
        g = jnp.tanh(gates[:, 2 * H:3 * H])
        o = jax.nn.sigmoid(gates[:, 3 * H:])
        c_new = f * c + i * g
        h_new = o * jnp.tanh(c_new)
        m = (t < lens)[:, None]
        return (jnp.where(m, h_new, h), jnp.where(m, c_new, c)), None

    init = (jnp.zeros((N, H), jnp.float32), jnp.zeros((N, H), jnp.float32))
    (h, _), _ = lax.scan(step, init, jnp.arange(T))
    enc = jnp.broadcast_to(encoder_output[:, :, None, :], (B, R, O, H)).reshape(N, H)
    return jnp.sum(h * enc, axis=1).reshape(B, R, O)


if __name__ == "__main__":
    # Small shapes, but layout-realistic: H a multiple of 128 so gate slices and
    # the recurrence matmul are lane-aligned; two grid blocks exercise tiling.
    B, R, O, T = 4, 4, 8, 12          # batch, num_rounds, num_options, max_sequence_length
    V, E, H = 64, 64, 128             # vocab, word_embedding_size, lstm_hidden_size

    key = jax.random.PRNGKey(0)
    ks = jax.random.split(key, 8)

    # deterministic synthetic parameters (shapes follow the module's __init__)
    embed = jax.random.normal(ks[0], (V, E), jnp.float32) * 0.1
    embed = embed.at[0].set(0.0)                          # padding_idx = PAD_INDEX = 0
    w_ih = jax.random.normal(ks[1], (E, 4 * H), jnp.float32) * 0.1
    w_hh = jax.random.normal(ks[2], (H, 4 * H), jnp.float32) * 0.1
    bias = (jax.random.normal(ks[3], (4 * H,), jnp.float32) * 0.1
            + jax.random.normal(ks[4], (4 * H,), jnp.float32) * 0.1)   # b_ih + b_hh
    params = dict(embed=embed, w_ih=w_ih, w_hh=w_hh, bias=bias)

    # batch: option token ids + lengths + encoder output
    opt_len = jax.random.randint(ks[5], (B, R, O), 0, T + 1).astype(jnp.int32)
    opt_len = opt_len.at[0, 0, 0].set(0)                  # exercise the zero-length path
    tok = jax.random.randint(ks[6], (B, R, O, T), 1, V).astype(jnp.int32)
    tpos = jnp.arange(T)[None, None, None, :]
    tok = jnp.where(tpos < opt_len[..., None], tok, 0)    # pad beyond length with PAD (0)
    enc_out = jax.random.normal(ks[7], (B, R, H), jnp.float32)

    scores = discriminative_decoder(enc_out, tok, opt_len, params)
    scores = jax.block_until_ready(scores)

    ref = reference(enc_out, tok, opt_len, params)
    assert scores.shape == (B, R, O)
    # matmul operands are bf16 in the kernel (f32 accumulation) -> loosened tol.
    assert jnp.allclose(scores, ref, atol=5e-2, rtol=5e-2), (scores, ref)
    print("KERNEL_OK")
</pallas_src>

<mosaic_0001>
module attributes {stable_mosaic.version = 11 : i64} {
  func.func @disc_decoder_kernel(%arg0: i32, %arg1: memref<2xi32, #tpu.memory_space<smem>>, %arg2: memref<64x1xi32, #tpu.memory_space<vmem>>, %arg3: memref<12x64x512xbf16, #tpu.memory_space<vmem>>, %arg4: memref<8x128xf32, #tpu.memory_space<vmem>>, %arg5: memref<128x512xbf16, #tpu.memory_space<vmem>>, %arg6: memref<8x8xf32, #tpu.memory_space<vmem>>, %arg7: memref<64x128xf32, #tpu.memory_space<vmem>>, %arg8: memref<64x128xf32, #tpu.memory_space<vmem>>) attributes {dimension_semantics = [#tpu.dimension_semantics<parallel>], iteration_bounds = array<i64: 2>, scalar_prefetch = 1 : i64, scratch_operands = 2 : i64, tpu.core_type = #tpu.core_type<tc>, window_params = [{transform_indices = @transform_0, window_bounds = array<i64: 64, 1>}, {transform_indices = @transform_1, window_bounds = array<i64: 12, 64, 512>}, {transform_indices = @transform_2, window_bounds = array<i64: 8, 128>}, {pipeline_mode = #tpu.pipeline_mode<synchronous>, transform_indices = @transform_3, window_bounds = array<i64: 128, 512>}, {transform_indices = @transform_4, window_bounds = array<i64: 8, 8>}]} {
    %c0 = arith.constant 0 : index
    %c0_0 = arith.constant 0 : index
    %0 = vector.load %arg2[%c0, %c0_0] : memref<64x1xi32, #tpu.memory_space<vmem>>, vector<64x1xi32>
    %c0_1 = arith.constant 0 : index
    %c0_2 = arith.constant 0 : index
    %1 = vector.load %arg5[%c0_1, %c0_2] : memref<128x512xbf16, #tpu.memory_space<vmem>>, vector<128x512xbf16>
    %2 = arith.index_cast %arg0 : i32 to index
    %3 = memref.load %arg1[%2] : memref<2xi32, #tpu.memory_space<smem>>
    %cst = arith.constant 0.000000e+00 : f32
    %4 = vector.broadcast %cst : f32 to vector<64x128xf32>
    %c0_3 = arith.constant 0 : index
    %c0_4 = arith.constant 0 : index
    %5 = vector.load %arg7[%c0_3, %c0_4] : memref<64x128xf32, #tpu.memory_space<vmem>>, vector<64x128xf32>
    tpu.vector_store %arg7[%c0_3, %c0_4], %4 {strides = array<i32>} : memref<64x128xf32, #tpu.memory_space<vmem>>, vector<64x128xf32>,
    %cst_5 = arith.constant 0.000000e+00 : f32
    %6 = vector.broadcast %cst_5 : f32 to vector<64x128xf32>
    %c0_6 = arith.constant 0 : index
    %c0_7 = arith.constant 0 : index
    %7 = vector.load %arg8[%c0_6, %c0_7] : memref<64x128xf32, #tpu.memory_space<vmem>>, vector<64x128xf32>
    tpu.vector_store %arg8[%c0_6, %c0_7], %6 {strides = array<i32>} : memref<64x128xf32, #tpu.memory_space<vmem>>, vector<64x128xf32>,
    %c0_i32 = arith.constant 0 : i32
    %8 = arith.subi %3, %c0_i32 : i32
    %c1_i32 = arith.constant 1 : i32
    %c1_i32_8 = arith.constant 1 : i32
    %9 = arith.subi %c1_i32, %c1_i32_8 : i32
    %10 = arith.addi %8, %9 : i32
    %c1_i32_9 = arith.constant 1 : i32
    %11 = arith.divsi %10, %c1_i32_9 : i32
    %c1_i32_10 = arith.constant 1 : i32
    %c0_i32_11 = arith.constant 0 : i32
    %c0_i32_12 = arith.constant 0 : i32
    %12 = arith.subi %11, %c0_i32_12 : i32
    %13 = arith.addi %c0_i32_12, %12 : i32
    %c1_i32_13 = arith.constant 1 : i32
    scf.for %arg9 = %c0_i32_12 to %13 step %c1_i32_13  : i32 {
      %22 = arith.muli %arg9, %c1_i32_10 : i32
      %23 = arith.addi %c0_i32_11, %22 : i32
      %c0_21 = arith.constant 0 : index
      %c0_22 = arith.constant 0 : index
      %24 = vector.load %arg7[%c0_21, %c0_22] : memref<64x128xf32, #tpu.memory_space<vmem>>, vector<64x128xf32>
      %c0_23 = arith.constant 0 : index
      %c0_24 = arith.constant 0 : index
      %25 = vector.load %arg8[%c0_23, %c0_24] : memref<64x128xf32, #tpu.memory_space<vmem>>, vector<64x128xf32>
      %26 = arith.index_cast %23 : i32 to index
      %c0_25 = arith.constant 0 : index
      %c0_26 = arith.constant 0 : index
      %27 = vector.load %arg3[%26, %c0_25, %c0_26] : memref<12x64x512xbf16, #tpu.memory_space<vmem>>, vector<1x64x512xbf16>
      %28 = vector.shape_cast %27 : vector<1x64x512xbf16> to vector<64x512xbf16>
      %29 = arith.extf %28 : vector<64x512xbf16> to vector<64x512xf32>
      %30 = arith.truncf %24 : vector<64x128xf32> to vector<64x128xbf16>
      %cst_27 = arith.constant dense<0.000000e+00> : vector<64x512xf32>
      %31 = tpu.matmul %30, %1, %cst_27 {dimension_numbers = #tpu.dot_dimension_numbers<[1], [0], [0], [1], [0, 0, 1, 1], [], []>} : vector<64x128xbf16>, vector<128x512xbf16>, vector<64x512xf32> -> vector<64x512xf32>
      %32 = arith.addf %29, %31 : vector<64x512xf32>
      %33 = vector.extract_strided_slice %32 {offsets = [0, 0], sizes = [64, 128], strides = [1, 1]} : vector<64x512xf32> to vector<64x128xf32>
      %34 = arith.negf %33 : vector<64x128xf32>
      %35 = math.exp %34 : vector<64x128xf32>
      %cst_28 = arith.constant 1.000000e+00 : f32
      %36 = vector.broadcast %cst_28 : f32 to vector<64x128xf32>
      %37 = arith.addf %36, %35 : vector<64x128xf32>
      %38 = arith.divf %36, %37 : vector<64x128xf32>
      %39 = vector.extract_strided_slice %32 {offsets = [0, 128], sizes = [64, 128], strides = [1, 1]} : vector<64x512xf32> to vector<64x128xf32>
      %40 = arith.negf %39 : vector<64x128xf32>
      %41 = math.exp %40 : vector<64x128xf32>
      %cst_29 = arith.constant 1.000000e+00 : f32
      %42 = vector.broadcast %cst_29 : f32 to vector<64x128xf32>
      %43 = arith.addf %42, %41 : vector<64x128xf32>
      %44 = arith.divf %42, %43 : vector<64x128xf32>
      %45 = vector.extract_strided_slice %32 {offsets = [0, 256], sizes = [64, 128], strides = [1, 1]} : vector<64x512xf32> to vector<64x128xf32>
      %46 = math.tanh %45 : vector<64x128xf32>
      %47 = vector.extract_strided_slice %32 {offsets = [0, 384], sizes = [64, 128], strides = [1, 1]} : vector<64x512xf32> to vector<64x128xf32>
      %48 = arith.negf %47 : vector<64x128xf32>
      %49 = math.exp %48 : vector<64x128xf32>
      %cst_30 = arith.constant 1.000000e+00 : f32
      %50 = vector.broadcast %cst_30 : f32 to vector<64x128xf32>
      %51 = arith.addf %50, %49 : vector<64x128xf32>
      %52 = arith.divf %50, %51 : vector<64x128xf32>
      %53 = arith.mulf %44, %25 : vector<64x128xf32>
      %54 = arith.mulf %38, %46 : vector<64x128xf32>
      %55 = arith.addf %53, %54 : vector<64x128xf32>
      %56 = math.tanh %55 : vector<64x128xf32>
      %57 = arith.mulf %52, %56 : vector<64x128xf32>
      %58 = vector.broadcast %23 : i32 to vector<64x1xi32>
      %59 = arith.cmpi slt, %58, %0 : vector<64x1xi32>
      %60 = vector.shape_cast %59 : vector<64x1xi1> to vector<64x1xi1>
      %61 = vector.broadcast %60 : vector<64x1xi1> to vector<64x128xi1>
      %62 = arith.select %61, %57, %24 : vector<64x128xi1>, vector<64x128xf32>
      %c0_31 = arith.constant 0 : index
      %c0_32 = arith.constant 0 : index
      %63 = vector.load %arg7[%c0_31, %c0_32] : memref<64x128xf32, #tpu.memory_space<vmem>>, vector<64x128xf32>
      tpu.vector_store %arg7[%c0_31, %c0_32], %62 {strides = array<i32>} : memref<64x128xf32, #tpu.memory_space<vmem>>, vector<64x128xf32>,
      %64 = vector.shape_cast %59 : vector<64x1xi1> to vector<64x1xi1>
      %65 = vector.broadcast %64 : vector<64x1xi1> to vector<64x128xi1>
      %66 = arith.select %65, %55, %25 : vector<64x128xi1>, vector<64x128xf32>
      %c0_33 = arith.constant 0 : index
      %c0_34 = arith.constant 0 : index
      %67 = vector.load %arg8[%c0_33, %c0_34] : memref<64x128xf32, #tpu.memory_space<vmem>>, vector<64x128xf32>
      tpu.vector_store %arg8[%c0_33, %c0_34], %66 {strides = array<i32>} : memref<64x128xf32, #tpu.memory_space<vmem>>, vector<64x128xf32>,
    }
    %c0_14 = arith.constant 0 : index
    %c0_15 = arith.constant 0 : index
    %14 = vector.load %arg7[%c0_14, %c0_15] : memref<64x128xf32, #tpu.memory_space<vmem>>, vector<64x128xf32>
    %15 = vector.shape_cast %14 : vector<64x128xf32> to vector<8x8x128xf32>
    %c0_16 = arith.constant 0 : index
    %c0_17 = arith.constant 0 : index
    %16 = vector.load %arg4[%c0_16, %c0_17] : memref<8x128xf32, #tpu.memory_space<vmem>>, vector<8x128xf32>
    %17 = vector.shape_cast %16 : vector<8x128xf32> to vector<8x1x128xf32>
    %18 = vector.broadcast %17 : vector<8x1x128xf32> to vector<8x8x128xf32>
    %19 = arith.mulf %15, %18 : vector<8x8x128xf32>
    %cst_18 = arith.constant dense<0.000000e+00> : vector<8x8xf32>
    %20 = vector.multi_reduction <add>, %19, %cst_18 [2] : vector<8x8x128xf32> to vector<8x8xf32>
    %c0_19 = arith.constant 0 : index
    %c0_20 = arith.constant 0 : index
    %21 = vector.load %arg6[%c0_19, %c0_20] : memref<8x8xf32, #tpu.memory_space<vmem>>, vector<8x8xf32>
    tpu.vector_store %arg6[%c0_19, %c0_20], %20 {strides = array<i32>} : memref<8x8xf32, #tpu.memory_space<vmem>>, vector<8x8xf32>,
    return
  }
  func.func @transform_0(%arg0: i32, %arg1: memref<2xi32, #tpu.memory_space<smem>>) -> (i32, i32) {
    %c0_i32 = arith.constant 0 : i32
    %c0_i32_0 = arith.constant 0 : i32
    return %arg0, %c0_i32 : i32, i32
  }
  func.func @transform_1(%arg0: i32, %arg1: memref<2xi32, #tpu.memory_space<smem>>) -> (i32, i32, i32) {
    %c0_i32 = arith.constant 0 : i32
    %c0_i32_0 = arith.constant 0 : i32
    %c0_i32_1 = arith.constant 0 : i32
    return %c0_i32, %arg0, %c0_i32_0 : i32, i32, i32
  }
  func.func @transform_2(%arg0: i32, %arg1: memref<2xi32, #tpu.memory_space<smem>>) -> (i32, i32) {
    %c0_i32 = arith.constant 0 : i32
    %c0_i32_0 = arith.constant 0 : i32
    return %arg0, %c0_i32 : i32, i32
  }
  func.func @transform_3(%arg0: i32, %arg1: memref<2xi32, #tpu.memory_space<smem>>) -> (i32, i32) {
    %c0_i32 = arith.constant 0 : i32
    %c0_i32_0 = arith.constant 0 : i32
    %c0_i32_1 = arith.constant 0 : i32
    return %c0_i32, %c0_i32_0 : i32, i32
  }
  func.func @transform_4(%arg0: i32, %arg1: memref<2xi32, #tpu.memory_space<smem>>) -> (i32, i32) {
    %c0_i32 = arith.constant 0 : i32
    %c0_i32_0 = arith.constant 0 : i32
    return %arg0, %c0_i32 : i32, i32
  }
}

</mosaic_0001>

<llo_original>
// kernel: tpu_custom_call.1
$region0: #{tpu_custom_call.1}
  #allocation0 [shape = 'u32[]', space=smem, size = 0x4, offset = 0x4, fixed_abs, tag = 'smem constant byte address 0x4 - core index']
  #allocation1 [shape = 'u32[144,128]{1,0:T(1,128)}', space=vmem, size = 0x12000, scoped, tag = 'internal scratch']
  #allocation2 [shape = 'f32[64,128]{1,0:T(8,128)}', space=vmem, size = 0x8000, scoped, tag = 'scratch operand']
  #allocation3 [shape = 'f32[64,128]{1,0:T(8,128)}', space=vmem, size = 0x8000, scoped, tag = 'scratch operand']
  #allocation4 [shape = 's32[1]{0}', space=sflag, size = 0x4, scoped, tag = 'scoped memory for tpu_custom_call.1']
  #allocation5 [shape = 'u8[512]{0}', space=smem, size = 0x200, scoped, tag = 'prefetched SMEM operand 0']
  #allocation11 [shape = 's32[]', space=sflag, size = 0x4, offset = 0, fixed_abs, tag = 'sflag constant byte address 0x0 - dummy sync flag']
  %s0 = inlined_call_operand.hbm [shape: s32[2], index: 0, kind: input, shape index: {}]
  %s1 = inlined_call_operand.vmem [shape: s32[128,1], index: 1, kind: input, shape index: {}]
  %s2 = inlined_call_operand.hbm [shape: bf16[12,128,512], index: 2, kind: input, shape index: {}]
  %s3 = inlined_call_operand.hbm [shape: f32[16,128], index: 3, kind: input, shape index: {}]
  %s4 = inlined_call_operand.hbm [shape: bf16[128,512], index: 4, kind: input, shape index: {}]
  %s5 = inlined_call_operand.vmem [shape: f32[16,8], index: 5, kind: output, shape index: {}]
  %s6 = sld [smem:[#allocation0]]
  $region68: #{tpu_custom_call.1} parent=0
    _
  %s8 = ssub.s32 1, %s6
  %s9 = scalar_select 0, %s8, %s6
  %11 = dma.hbm_to_smem %s0, 16, [#allocation5], [#allocation4]
  %12 = dma.done [#allocation4], 16
  %13 = sfence
  $region1: #{tpu_custom_call.1} parent=0
    #allocation6 [shape = 'u8[1572864]{0}', space=vmem, size = 0x180000, scoped, tag = 'input window, operand 2']
    #allocation7 [shape = 's32[2]{0}', space=sflag, size = 0x8, scoped, tag = 'scoped memory for tpu_custom_call.1']
    #allocation8 [shape = 'u8[8192]{0}', space=vmem, size = 0x2000, scoped, tag = 'input window, operand 3']
    #allocation9 [shape = 's32[2]{0}', space=sflag, size = 0x8, scoped, tag = 'scoped memory for tpu_custom_call.1']
    #allocation10 [shape = 'u8[131072]{0}', space=vmem, size = 0x20000, scoped, tag = 'input window, operand 4, single buffered']
    %14 = vsyncpa [#allocation7], 0
    %s15 = scalar_lea.sflag [#allocation7], 1
    %16 = vsyncpa %s15, 0
    %17 = vsyncpa [#allocation9], 0
    %s18 = scalar_lea.sflag [#allocation9], 1
    %19 = vsyncpa %s18, 0
    loop: start=0, step=1, limit=4
    $region2: #{tpu_custom_call.1} parent=1 // loop_pre_header
      _
    $region3: #{tpu_custom_call.1} parent=1 // loop_header
      %s21 = sphi 0, %s25
      %p22 = scmp.ge.s32.totalorder %s21, 4
      %s31 = sphi 0, %s33
      %s34 = sphi 0, %s31
      %s35 = sphi 0, %s34
      %s51 = sphi 0, %s35
      %s57 = sphi 0, %s59
      %s60 = sphi 0, %s57
      %s61 = sphi 0, %s60
      %s77 = sphi 0, %s61
      %s83 = sphi 0, %s85
      %s86 = sphi 0, %s83
      %s87 = sphi 0, %s86
      %s103 = sphi 0, %s87
      %s107 = sphi 0, %s107
      %s109 = sphi 0, %s107
      %s110 = sphi 0, %s109
      %s124 = sphi 0, %s110
      %s130 = sphi 0, %s132
      %s133 = sphi 0, %s130
      %s134 = sphi 0, %s133
      %s150 = sphi 0, %s134
    $region4: #{tpu_custom_call.1} parent=1 // loop_header_branch
      %24 = sbr.rel (%p22) target = $region8
    $region5: #{tpu_custom_call.1} parent=1 // loop_body
      %s26 = ssub.s32 %s21, 1
      %s27 = ssub.s32 %s21, 2
      %s28 = sadd.s32 %s21, 1
      %s29 = ssub.s32 %s21, %s28
      %p30 = scmp.eq.s32.totalorder %s29, 0
      %s32 = sadd.s32 %s31, 1
      %s33 = scalar_select %p30, %s31, %s32
      %p36 = pneg %p30
      %p37 = scmp.eq.s32.totalorder %s21, 1
      %p38 = por %p36, %p37
      %p39 = scmp.ne.s32.totalorder %s31, %s34
      %p40 = scmp.eq.s32.totalorder %s21, 0
      %p41 = por %p39, %p40
      %p42 = scmp.ne.s32.totalorder %s31, %s34
      %p43 = scmp.eq.s32.totalorder %s26, 1
      %p44 = por %p42, %p43
      %p45 = scmp.ne.s32.totalorder %s34, %s35
      %p46 = scmp.eq.s32.totalorder %s26, 0
      %p47 = por %p45, %p46
      %p48 = scmp.ne.s32.totalorder %s34, %s35
      %p49 = scmp.eq.s32.totalorder %s27, 1
      %p50 = por %p48, %p49
      %p52 = scmp.ne.s32.totalorder %s35, %s51
      %p53 = scmp.eq.s32.totalorder %s27, 0
      %p54 = por %p52, %p53
      %s55 = ssub.s32 %s21, %s28
      %p56 = scmp.eq.s32.totalorder %s55, 0
      %s58 = sadd.s32 %s57, 1
      %s59 = scalar_select %p56, %s57, %s58
      %p62 = pneg %p56
      %p63 = scmp.eq.s32.totalorder %s21, 1
      %p64 = por %p62, %p63
      %p65 = scmp.ne.s32.totalorder %s57, %s60
      %p66 = scmp.eq.s32.totalorder %s21, 0
      %p67 = por %p65, %p66
      %p68 = scmp.ne.s32.totalorder %s57, %s60
      %p69 = scmp.eq.s32.totalorder %s26, 1
      %p70 = por %p68, %p69
      %p71 = scmp.ne.s32.totalorder %s60, %s61
      %p72 = scmp.eq.s32.totalorder %s26, 0
      %p73 = por %p71, %p72
      %p74 = scmp.ne.s32.totalorder %s60, %s61
      %p75 = scmp.eq.s32.totalorder %s27, 1
      %p76 = por %p74, %p75
      %p78 = scmp.ne.s32.totalorder %s61, %s77
      %p79 = scmp.eq.s32.totalorder %s27, 0
      %p80 = por %p78, %p79
      %s81 = ssub.s32 %s21, %s28
      %p82 = scmp.eq.s32.totalorder %s81, 0
      %s84 = sadd.s32 %s83, 1
      %s85 = scalar_select %p82, %s83, %s84
      %p88 = pneg %p82
      %p89 = scmp.eq.s32.totalorder %s21, 1
      %p90 = por %p88, %p89
      %p91 = scmp.ne.s32.totalorder %s83, %s86
      %p92 = scmp.eq.s32.totalorder %s21, 0
      %p93 = por %p91, %p92
      %p94 = scmp.ne.s32.totalorder %s83, %s86
      %p95 = scmp.eq.s32.totalorder %s26, 1
      %p96 = por %p94, %p95
      %p97 = scmp.ne.s32.totalorder %s86, %s87
      %p98 = scmp.eq.s32.totalorder %s26, 0
      %p99 = por %p97, %p98
      %p100 = scmp.ne.s32.totalorder %s86, %s87
      %p101 = scmp.eq.s32.totalorder %s27, 1
      %p102 = por %p100, %p101
      %p104 = scmp.ne.s32.totalorder %s87, %s103
      %p105 = scmp.eq.s32.totalorder %s27, 0
      %p106 = por %p104, %p105
      %s108 = sadd.s32 %s107, 1
      %p111 = scmp.eq.s32.totalorder %s21, 1
      %p112 = scmp.ne.s32.totalorder %s107, %s109
      %p113 = scmp.eq.s32.totalorder %s21, 0
      %p114 = por %p112, %p113
      %p115 = scmp.ne.s32.totalorder %s107, %s109
      %p116 = scmp.eq.s32.totalorder %s26, 1
      %p117 = por %p115, %p116
      %p118 = scmp.ne.s32.totalorder %s109, %s110
      %p119 = scmp.eq.s32.totalorder %s26, 0
      %p120 = por %p118, %p119
      %p121 = scmp.ne.s32.totalorder %s109, %s110
      %p122 = scmp.eq.s32.totalorder %s27, 1
      %p123 = por %p121, %p122
      %p125 = scmp.ne.s32.totalorder %s110, %s124
      %p126 = scmp.eq.s32.totalorder %s27, 0
      %p127 = por %p125, %p126
      %s128 = ssub.s32 %s21, %s28
      %p129 = scmp.eq.s32.totalorder %s128, 0
      %s131 = sadd.s32 %s130, 1
      %s132 = scalar_select %p129, %s130, %s131
      %p135 = pneg %p129
      %p136 = scmp.eq.s32.totalorder %s21, 1
      %p137 = por %p135, %p136
      %p138 = scmp.ne.s32.totalorder %s130, %s133
      %p139 = scmp.eq.s32.totalorder %s21, 0
      %p140 = por %p138, %p139
      %p141 = scmp.ne.s32.totalorder %s130, %s133
      %p142 = scmp.eq.s32.totalorder %s26, 1
      %p143 = por %p141, %p142
      %p144 = scmp.ne.s32.totalorder %s133, %s134
      %p145 = scmp.eq.s32.totalorder %s26, 0
      %p146 = por %p144, %p145
      %p147 = scmp.ne.s32.totalorder %s133, %s134
      %p148 = scmp.eq.s32.totalorder %s27, 1
      %p149 = por %p147, %p148
      %p151 = scmp.ne.s32.totalorder %s134, %s150
      %p152 = scmp.eq.s32.totalorder %s27, 0
      %p153 = por %p151, %p152
      %p154 = scmp.le.s32.totalorder 1, %s21
      %p155 = scmp.lt.s32.totalorder %s21, 3
      %p156 = pnand %p154, %p155
      %p157 = pneg %p156
      // Predicated region
      $region9: #{tpu_custom_call.1} parent=5 // pred_check
        _
      $region10: #{tpu_custom_call.1} parent=5 // pred_check_branch
        %159 = sbr.rel (%p156) target = $region12
      $region11: #{tpu_custom_call.1} parent=5 // pred_region
        %s160 = ssub.s32 %s21, 1
        // Predicated region
        $region13: #{tpu_custom_call.1} parent=11 // pred_check
          %p161 = pneg %p120
        $region14: #{tpu_custom_call.1} parent=11 // pred_check_branch
          %163 = sbr.rel (%p161) target = $region16
        $region15: #{tpu_custom_call.1} parent=11 // pred_region
          %s165 = ssub.s32 4096, 4096
          %166 = vsyncadd [#allocation9], %s165
          %s167 = sshll.u32 [#allocation10], 4
          %s168 = int_to_ptr.vmem [resolvable:$true] %s167
          %173 = dma.hbm_to_vmem [thread:$0]  %s4, 4096, %s168, [#allocation9], 256, 256, 16
        $region16: #{tpu_custom_call.1} parent=11 // pred_fallthru
          _
      $region12: #{tpu_custom_call.1} parent=5 // pred_fallthru
        _
      %p174 = scmp.lt.s32.totalorder %s21, 2
      // Predicated region
      $region17: #{tpu_custom_call.1} parent=5 // pred_check
        %p175 = pneg %p174
      $region18: #{tpu_custom_call.1} parent=5 // pred_check_branch
        %177 = sbr.rel (%p175) target = $region20
      $region19: #{tpu_custom_call.1} parent=5 // pred_region
        // Predicated region
        $region21: #{tpu_custom_call.1} parent=19 // pred_check
          %p178 = pneg %p41
        $region22: #{tpu_custom_call.1} parent=19 // pred_check_branch
          %180 = sbr.rel (%p178) target = $region24
        $region23: #{tpu_custom_call.1} parent=19 // pred_region
          %s181 = smul.u32 8, %s21
          %p182 = scmp.lt.s32.totalorder %s181, 15
          %s183 = scalar_select %p182, %s181, 15
          %s184 = smul.addr %s183, 8
          %s185 = scalar_lea.vmem %s1, %s184
          %s186 = smul.u32 8, %s21
        $region24: #{tpu_custom_call.1} parent=19 // pred_fallthru
          _
        // Predicated region
        $region25: #{tpu_custom_call.1} parent=19 // pred_check
          %p187 = pneg %p67
        $region26: #{tpu_custom_call.1} parent=19 // pred_check_branch
          %189 = sbr.rel (%p187) target = $region28
        $region27: #{tpu_custom_call.1} parent=19 // pred_region
          #allocation12 [shape = 'u32[6]{0}', space=smem, size = 0x18, scoped, tag = 'DMA stride descriptor']
          %s190 = sand.u32 %s57, 1
          %s191 = scalar_lea.sflag [#allocation7], %s190
          %s192 = sand.u32 %s57, 1
          %s193 = smul.addr %s192, 1536
          %s194 = scalar_lea.vmem [#allocation6], %s193
          %s195 = smul.u32 8, %s21
          %s197 = ssub.s32 24576, 24576
          %198 = vsyncadd %s191, %s197
          %s199 = smul.addr %s195, 4
          %s200 = smul.addr %s199, 64
          %s201 = scalar_lea.hbm %s2, %s200
          %s203 = sshll.u32 1, 14
          %s204 = sxor.u32 4294967295, %s203
          %s206 = sld [smem:[#allocation0]]
          %s207 = sadd.s32 2, %s206
          %s209 = sshll.u32 7, 26
          %s210 = sxor.u32 4294967295, %s209
          %s211 = sand.u32 0, %s210
          %s212 = sshll.u32 %s207, 26
          %s213 = sor.u32 %s211, %s212
          %s214 = sshll.u32 %s194, 4
          %s215 = int_to_ptr.vmem [resolvable:$true] %s214
          %221 = sst [smem:[#allocation12]] 4096
          %s222 = scalar_lea.smem [#allocation12], 1
          %223 = sst [smem:[%s222]] 2048
          %s224 = scalar_lea.smem [#allocation12], 2
          %225 = sst [smem:[%s224]] 8
          %s226 = scalar_lea.smem [#allocation12], 3
          %227 = sst [smem:[%s226]] 256
          %s228 = scalar_lea.smem [#allocation12], 4
          %229 = sst [smem:[%s228]] 256
          %s230 = scalar_lea.smem [#allocation12], 5
          %231 = sst [smem:[%s230]] 16
          %233 = dma.general %s201, 24576, %s215, %s191, [#allocation11], [#allocation12], %s213, 0
        $region28: #{tpu_custom_call.1} parent=19 // pred_fallthru
          _
        // Predicated region
        $region29: #{tpu_custom_call.1} parent=19 // pred_check
          %p234 = pneg %p93
        $region30: #{tpu_custom_call.1} parent=19 // pred_check_branch
          %236 = sbr.rel (%p234) target = $region32
        $region31: #{tpu_custom_call.1} parent=19 // pred_region
          %s237 = sand.u32 %s21, 1
          %s238 = scalar_lea.sflag [#allocation9], %s237
          %s239 = sand.u32 %s83, 1
          %s240 = smul.addr %s239, 8
          %s241 = scalar_lea.vmem [#allocation8], %s240
          %s243 = ssub.s32 128, 128
          %244 = vsyncadd %s238, %s243
          %s245 = smul.addr %s21, 128
          %s246 = scalar_lea.hbm %s3, %s245
          %s248 = sshll.u32 %s241, 4
          %s249 = int_to_ptr.vmem [resolvable:$true] %s248
          %251 = dma.hbm_to_vmem [thread:$0]  %s246, 128, %s249, %s238
        $region32: #{tpu_custom_call.1} parent=19 // pred_fallthru
          _
      $region20: #{tpu_custom_call.1} parent=5 // pred_fallthru
        _
      %p252 = scmp.le.s32.totalorder 1, %s21
      %p253 = scmp.lt.s32.totalorder %s21, 3
      %p254 = pnand %p252, %p253
      %p255 = pneg %p254
      // Predicated region
      $region33: #{tpu_custom_call.1} parent=5 // pred_check
        _
      $region34: #{tpu_custom_call.1} parent=5 // pred_check_branch
        %257 = sbr.rel (%p254) target = $region36
      $region35: #{tpu_custom_call.1} parent=5 // pred_region
        %s258 = ssub.s32 %s21, 1
        %s259 = sand.u32 %s60, 1
        %s260 = scalar_lea.sflag [#allocation7], %s259
        %s261 = sand.u32 %s60, 1
        %s262 = smul.addr %s261, 1536
        %s263 = scalar_lea.vmem [#allocation6], %s262
        // Predicated region
        $region37: #{tpu_custom_call.1} parent=35 // pred_check
          %p264 = pneg %p73
        $region38: #{tpu_custom_call.1} parent=35 // pred_check_branch
          %266 = sbr.rel (%p264) target = $region40
        $region39: #{tpu_custom_call.1} parent=35 // pred_region
          %267 = dma.done %s260, 24576
        $region40: #{tpu_custom_call.1} parent=35 // pred_fallthru
          _
        %s268 = sand.u32 %s26, 1
        %s269 = scalar_lea.sflag [#allocation9], %s268
        %s270 = sand.u32 %s86, 1
        %s271 = smul.addr %s270, 8
        %s272 = scalar_lea.vmem [#allocation8], %s271
        // Predicated region
        $region41: #{tpu_custom_call.1} parent=35 // pred_check
          %p273 = pneg %p99
        $region42: #{tpu_custom_call.1} parent=35 // pred_check_branch
          %275 = sbr.rel (%p273) target = $region44
        $region43: #{tpu_custom_call.1} parent=35 // pred_region
          %276 = dma.done %s269, 128
        $region44: #{tpu_custom_call.1} parent=35 // pred_fallthru
          _
        // Predicated region
        $region45: #{tpu_custom_call.1} parent=35 // pred_check
          %p277 = pneg %p120
        $region46: #{tpu_custom_call.1} parent=35 // pred_check_branch
          %279 = sbr.rel (%p277) target = $region48
        $region47: #{tpu_custom_call.1} parent=35 // pred_region
          %280 = dma.done [#allocation9], 4096
        $region48: #{tpu_custom_call.1} parent=35 // pred_fallthru
          _
        %s281 = smul.u32 8, %s26
        %p282 = scmp.lt.s32.totalorder %s281, 15
        %s283 = scalar_select %p282, %s281, 15
        %s284 = smul.addr %s283, 8
        %s285 = scalar_lea.vmem %s1, %s284
        %p286 = pneg %p47
        %p287 = pneg %p44
        %s288 = sand.u32 %s60, 1
        %s289 = scalar_lea.sflag [#allocation7], %s288
        %s290 = sand.u32 %s60, 1
        %s291 = smul.addr %s290, 1536
        %s292 = scalar_lea.vmem [#allocation6], %s291
        %p293 = pneg %p73
        %p294 = pneg %p70
        %s295 = sand.u32 %s26, 1
        %s296 = scalar_lea.sflag [#allocation9], %s295
        %s297 = sand.u32 %s86, 1
        %s298 = smul.addr %s297, 8
        %s299 = scalar_lea.vmem [#allocation8], %s298
        %p300 = pneg %p99
        %p301 = pneg %p96
        %p302 = pneg %p120
        %p303 = pneg %p117
        %p304 = pneg %p146
        %p305 = pneg %p143
        %p306 = scmp.lt.s32.totalorder %s26, 1
        %s307 = scalar_select %p306, %s26, 1
        %s308 = smul.addr %s307, 8
        %s309 = scalar_lea.vmem %s5, %s308
        %s310 = smul.u32 8, %s26
        %p311 = scmp.lt.s32.totalorder %s310, 15
        %s312 = scalar_select %p311, %s310, 15
        %s313 = smul.addr %s312, 8
        %s314 = scalar_lea.vmem %s1, %s313
        %s315 = smul.u32 8, %s26
        %s316 = smul.u32 8, %s26
        %p317 = scmp.lt.s32.totalorder %s26, 1
        %s318 = scalar_select %p317, %s26, 1
        %s319 = smul.addr %s318, 8
        %s320 = scalar_lea.vmem %s5, %s319
        %v322 = vld [vmem:[%s314] sm:$0xff]
        %v323 = vld [vmem:[%s314 + $0x8] sm:$0xff]
        %v324 = vld [vmem:[%s314 + $0x10] sm:$0xff]
        %v325 = vld [vmem:[%s314 + $0x18] sm:$0xff]
        %v326 = vld [vmem:[%s314 + $0x20] sm:$0xff]
        %v327 = vld [vmem:[%s314 + $0x28] sm:$0xff]
        %v328 = vld [vmem:[%s314 + $0x30] sm:$0xff]
        %v329 = vld [vmem:[%s314 + $0x38] sm:$0xff]
        %v330 = vld [vmem:[#allocation10] sm:$0xff]
        %v331 = vld [vmem:[#allocation10 + $0x8] sm:$0xff]
        %v332 = vld [vmem:[#allocation10 + $0x10] sm:$0xff]
        %v333 = vld [vmem:[#allocation10 + $0x18] sm:$0xff]
        %v334 = vld [vmem:[#allocation10 + $0x20] sm:$0xff]
        %v335 = vld [vmem:[#allocation10 + $0x28] sm:$0xff]
        %v336 = vld [vmem:[#allocation10 + $0x30] sm:$0xff]
        %v337 = vld [vmem:[#allocation10 + $0x38] sm:$0xff]
        %v338 = vld [vmem:[#allocation10 + $0x40] sm:$0xff]
        %v339 = vld [vmem:[#allocation10 + $0x48] sm:$0xff]
        %v340 = vld [vmem:[#allocation10 + $0x50] sm:$0xff]
        %v341 = vld [vmem:[#allocation10 + $0x58] sm:$0xff]
        %v342 = vld [vmem:[#allocation10 + $0x60] sm:$0xff]
        %v343 = vld [vmem:[#allocation10 + $0x68] sm:$0xff]
        %v344 = vld [vmem:[#allocation10 + $0x70] sm:$0xff]
        %v345 = vld [vmem:[#allocation10 + $0x78] sm:$0xff]
        %v346 = vld [vmem:[#allocation10 + $0x80] sm:$0xff]
        %v347 = vld [vmem:[#allocation10 + $0x88] sm:$0xff]
        %v348 = vld [vmem:[#allocation10 + $0x90] sm:$0xff]
        %v349 = vld [vmem:[#allocation10 + $0x98] sm:$0xff]
        %v350 = vld [vmem:[#allocation10 + $0xa0] sm:$0xff]
        %v351 = vld [vmem:[#allocation10 + $0xa8] sm:$0xff]
        %v352 = vld [vmem:[#allocation10 + $0xb0] sm:$0xff]
        %v353 = vld [vmem:[#allocation10 + $0xb8] sm:$0xff]
        %v354 = vld [vmem:[#allocation10 + $0xc0] sm:$0xff]
        %v355 = vld [vmem:[#allocation10 + $0xc8] sm:$0xff]
        %v356 = vld [vmem:[#allocation10 + $0xd0] sm:$0xff]
        %v357 = vld [vmem:[#allocation10 + $0xd8] sm:$0xff]
        %v358 = vld [vmem:[#allocation10 + $0xe0] sm:$0xff]
        %v359 = vld [vmem:[#allocation10 + $0xe8] sm:$0xff]
        %v360 = vld [vmem:[#allocation10 + $0xf0] sm:$0xff]
        %v361 = vld [vmem:[#allocation10 + $0xf8] sm:$0xff]
        %s362 = sld [smem:[#allocation5 + %s26]]
        %363 = vst [vmem:[#allocation2] sm:$0xff] 0.0
        %364 = vst [vmem:[#allocation2 + $0x8] sm:$0xff] 0.0
        %365 = vst [vmem:[#allocation2 + $0x10] sm:$0xff] 0.0
        %366 = vst [vmem:[#allocation2 + $0x18] sm:$0xff] 0.0
        %367 = vst [vmem:[#allocation2 + $0x20] sm:$0xff] 0.0
        %368 = vst [vmem:[#allocation2 + $0x28] sm:$0xff] 0.0
        %369 = vst [vmem:[#allocation2 + $0x30] sm:$0xff] 0.0
        %370 = vst [vmem:[#allocation2 + $0x38] sm:$0xff] 0.0
        %371 = vst [vmem:[#allocation3] sm:$0xff] 0.0
        %372 = vst [vmem:[#allocation3 + $0x8] sm:$0xff] 0.0
        %373 = vst [vmem:[#allocation3 + $0x10] sm:$0xff] 0.0
        %374 = vst [vmem:[#allocation3 + $0x18] sm:$0xff] 0.0
        %375 = vst [vmem:[#allocation3 + $0x20] sm:$0xff] 0.0
        %376 = vst [vmem:[#allocation3 + $0x28] sm:$0xff] 0.0
        %377 = vst [vmem:[#allocation3 + $0x30] sm:$0xff] 0.0
        %378 = vst [vmem:[#allocation3 + $0x38] sm:$0xff] 0.0
        // While loop
        $region49: #{tpu_custom_call.1} parent=35 // loop_pre_header
          _
        $region50: #{tpu_custom_call.1} parent=35 // loop_header
          %s380 = sphi 0, %s382
          %p381 = scmp.ge.s32.totalorder %s380, %s362
        $region51: #{tpu_custom_call.1} parent=35 // loop_header_branch
          %384 = sbr.rel (%p381) target = $region55
        $region52: #{tpu_custom_call.1} parent=35 // loop_body
          %v385 = vld [vmem:[#allocation2] sm:$0xff]
          %v386 = vld [vmem:[#allocation2 + $0x8] sm:$0xff]
          %v387 = vld [vmem:[#allocation2 + $0x10] sm:$0xff]
          %v388 = vld [vmem:[#allocation2 + $0x18] sm:$0xff]
          %v389 = vld [vmem:[#allocation2 + $0x20] sm:$0xff]
          %v390 = vld [vmem:[#allocation2 + $0x28] sm:$0xff]
          %v391 = vld [vmem:[#allocation2 + $0x30] sm:$0xff]
          %v392 = vld [vmem:[#allocation2 + $0x38] sm:$0xff]
          %v393 = vld [vmem:[#allocation3] sm:$0xff]
          %v394 = vld [vmem:[#allocation3 + $0x8] sm:$0xff]
          %v395 = vld [vmem:[#allocation3 + $0x10] sm:$0xff]
          %v396 = vld [vmem:[#allocation3 + $0x18] sm:$0xff]
          %v397 = vld [vmem:[#allocation3 + $0x20] sm:$0xff]
          %v398 = vld [vmem:[#allocation3 + $0x28] sm:$0xff]
          %v399 = vld [vmem:[#allocation3 + $0x30] sm:$0xff]
          %v400 = vld [vmem:[#allocation3 + $0x38] sm:$0xff]
          %s401 = smul.u32 %s380, 32
          %s402 = smul.addr %s401, 4
          %s403 = scalar_lea.vmem %s263, %s402 [#allocation6]
          %v404 = vld [vmem:[%s403] sm:$0xff]
          %v405 = vld [vmem:[%s403 + $0x8] sm:$0xff]
          %v406 = vld [vmem:[%s403 + $0x10] sm:$0xff]
          %v407 = vld [vmem:[%s403 + $0x18] sm:$0xff]
          %v408 = vld [vmem:[%s403 + $0x20] sm:$0xff]
          %v409 = vld [vmem:[%s403 + $0x28] sm:$0xff]
          %v410 = vld [vmem:[%s403 + $0x30] sm:$0xff]
          %v411 = vld [vmem:[%s403 + $0x38] sm:$0xff]
          %v412 = vld [vmem:[%s403 + $0x40] sm:$0xff]
          %v413 = vld [vmem:[%s403 + $0x48] sm:$0xff]
          %v414 = vld [vmem:[%s403 + $0x50] sm:$0xff]
          %v415 = vld [vmem:[%s403 + $0x58] sm:$0xff]
          %v416 = vld [vmem:[%s403 + $0x60] sm:$0xff]
          %v417 = vld [vmem:[%s403 + $0x68] sm:$0xff]
          %v418 = vld [vmem:[%s403 + $0x70] sm:$0xff]
          %v419 = vld [vmem:[%s403 + $0x78] sm:$0xff]
          %v420 = vunpack.c.l.bf16 %v404
          %v421 = vunpack.c.h.bf16 %v404
          %v422 = vunpack.c.l.bf16 %v405
          %v423 = vunpack.c.h.bf16 %v405
          %v424 = vunpack.c.l.bf16 %v406
          %v425 = vunpack.c.h.bf16 %v406
          %v426 = vunpack.c.l.bf16 %v407
          %v427 = vunpack.c.h.bf16 %v407
          %v428 = vunpack.c.l.bf16 %v408
          %v429 = vunpack.c.h.bf16 %v408
          %v430 = vunpack.c.l.bf16 %v409
          %v431 = vunpack.c.h.bf16 %v409
          %v432 = vunpack.c.l.bf16 %v410
          %v433 = vunpack.c.h.bf16 %v410
          %v434 = vunpack.c.l.bf16 %v411
          %v435 = vunpack.c.h.bf16 %v411
          %v436 = vunpack.c.l.bf16 %v412
          %v437 = vunpack.c.h.bf16 %v412
          %v438 = vunpack.c.l.bf16 %v413
          %v439 = vunpack.c.h.bf16 %v413
          %v440 = vunpack.c.l.bf16 %v414
          %v441 = vunpack.c.h.bf16 %v414
          %v442 = vunpack.c.l.bf16 %v415
          %v443 = vunpack.c.h.bf16 %v415
          %v444 = vunpack.c.l.bf16 %v416
          %v445 = vunpack.c.h.bf16 %v416
          %v446 = vunpack.c.l.bf16 %v417
          %v447 = vunpack.c.h.bf16 %v417
          %v448 = vunpack.c.l.bf16 %v418
          %v449 = vunpack.c.h.bf16 %v418
          %v450 = vunpack.c.l.bf16 %v419
          %v451 = vunpack.c.h.bf16 %v419
          %v452 = vpack.c.bf16 %v386, %v385
          %v453 = vpack.c.bf16 %v388, %v387
          %v454 = vpack.c.bf16 %v390, %v389
          %v455 = vpack.c.bf16 %v392, %v391
          %v488 = vunpack.c.l.b16 %v330
          %v489 = vunpack.c.h.b16 %v330
          %v490 = vunpack.c.l.b16 %v331
          %v491 = vunpack.c.h.b16 %v331
          %v492 = vunpack.c.l.b16 %v332
          %v493 = vunpack.c.h.b16 %v332
          %v494 = vunpack.c.l.b16 %v333
          %v495 = vunpack.c.h.b16 %v333
          %v496 = vunpack.c.l.b16 %v334
          %v497 = vunpack.c.h.b16 %v334
          %v498 = vunpack.c.l.b16 %v335
          %v499 = vunpack.c.h.b16 %v335
          %v500 = vunpack.c.l.b16 %v336
          %v501 = vunpack.c.h.b16 %v336
          %v502 = vunpack.c.l.b16 %v337
          %v503 = vunpack.c.h.b16 %v337
          %v504 = vunpack.c.l.b16 %v338
          %v505 = vunpack.c.h.b16 %v338
          %v506 = vunpack.c.l.b16 %v339
          %v507 = vunpack.c.h.b16 %v339
          %v508 = vunpack.c.l.b16 %v340
          %v509 = vunpack.c.h.b16 %v340
          %v510 = vunpack.c.l.b16 %v341
          %v511 = vunpack.c.h.b16 %v341
          %v512 = vunpack.c.l.b16 %v342
          %v513 = vunpack.c.h.b16 %v342
          %v514 = vunpack.c.l.b16 %v343
          %v515 = vunpack.c.h.b16 %v343
          %v516 = vunpack.c.l.b16 %v344
          %v517 = vunpack.c.h.b16 %v344
          %v518 = vunpack.c.l.b16 %v345
          %v519 = vunpack.c.h.b16 %v345
          %v520 = vunpack.c.l.b16 %v346
          %v521 = vunpack.c.h.b16 %v346
          %v522 = vunpack.c.l.b16 %v347
          %v523 = vunpack.c.h.b16 %v347
          %v524 = vunpack.c.l.b16 %v348
          %v525 = vunpack.c.h.b16 %v348
          %v526 = vunpack.c.l.b16 %v349
          %v527 = vunpack.c.h.b16 %v349
          %v528 = vunpack.c.l.b16 %v350
          %v529 = vunpack.c.h.b16 %v350
          %v530 = vunpack.c.l.b16 %v351
          %v531 = vunpack.c.h.b16 %v351
          %v532 = vunpack.c.l.b16 %v352
          %v533 = vunpack.c.h.b16 %v352
          %v534 = vunpack.c.l.b16 %v353
          %v535 = vunpack.c.h.b16 %v353
          %v536 = vunpack.c.l.b16 %v354
          %v537 = vunpack.c.h.b16 %v354
          %v538 = vunpack.c.l.b16 %v355
          %v539 = vunpack.c.h.b16 %v355
          %v540 = vunpack.c.l.b16 %v356
          %v541 = vunpack.c.h.b16 %v356
          %v542 = vunpack.c.l.b16 %v357
          %v543 = vunpack.c.h.b16 %v357
          %v544 = vunpack.c.l.b16 %v358
          %v545 = vunpack.c.h.b16 %v358
          %v546 = vunpack.c.l.b16 %v359
          %v547 = vunpack.c.h.b16 %v359
          %v548 = vunpack.c.l.b16 %v360
          %v549 = vunpack.c.h.b16 %v360
          %v550 = vunpack.c.l.b16 %v361
          %v551 = vunpack.c.h.b16 %v361
          %v552 = vpack.c.b16 %v492, %v488
          %v553 = vpack.c.b16 %v493, %v489
          %v554 = vpack.c.b16 %v494, %v490
          %v555 = vpack.c.b16 %v495, %v491
          %v556 = vpack.c.b16 %v500, %v496
          %v557 = vpack.c.b16 %v501, %v497
          %v558 = vpack.c.b16 %v502, %v498
          %v559 = vpack.c.b16 %v503, %v499
          %v560 = vpack.c.b16 %v508, %v504
          %v561 = vpack.c.b16 %v509, %v505
          %v562 = vpack.c.b16 %v510, %v506
          %v563 = vpack.c.b16 %v511, %v507
          %v564 = vpack.c.b16 %v516, %v512
          %v565 = vpack.c.b16 %v517, %v513
          %v566 = vpack.c.b16 %v518, %v514
          %v567 = vpack.c.b16 %v519, %v515
          %v568 = vpack.c.b16 %v524, %v520
          %v569 = vpack.c.b16 %v525, %v521
          %v570 = vpack.c.b16 %v526, %v522
          %v571 = vpack.c.b16 %v527, %v523
          %v572 = vpack.c.b16 %v532, %v528
          %v573 = vpack.c.b16 %v533, %v529
          %v574 = vpack.c.b16 %v534, %v530
          %v575 = vpack.c.b16 %v535, %v531
          %v576 = vpack.c.b16 %v540, %v536
          %v577 = vpack.c.b16 %v541, %v537
          %v578 = vpack.c.b16 %v542, %v538
          %v579 = vpack.c.b16 %v543, %v539
          %v580 = vpack.c.b16 %v548, %v544
          %v581 = vpack.c.b16 %v549, %v545
          %v582 = vpack.c.b16 %v550, %v546
          %v583 = vpack.c.b16 %v551, %v547
          %616 = vmatprep.subr.bf16.mxu0 %v553
          %617 = vmatpush1.bf16.msra.mxu0 %v552
          %618 = vmatprep.subr.bf16.mxu0 %v557
          %619 = vmatpush1.bf16.msra.mxu0 %v556
          %620 = vmatprep.subr.bf16.mxu0 %v561
          %621 = vmatpush1.bf16.msra.mxu0 %v560
          %622 = vmatprep.subr.bf16.mxu0 %v565
          %623 = vmatpush1.bf16.msra.mxu0 %v564
          %624 = vmatprep.subr.bf16.mxu0 %v569
          %625 = vmatpush1.bf16.msra.mxu0 %v568
          %626 = vmatprep.subr.bf16.mxu0 %v573
          %627 = vmatpush1.bf16.msra.mxu0 %v572
          %628 = vmatprep.subr.bf16.mxu0 %v577
          %629 = vmatpush1.bf16.msra.mxu0 %v576
          %630 = vmatprep.subr.bf16.mxu0 %v581
          %631 = vmatpush1.bf16.msra.mxu0 %v580
          %632 = vmatprep.subr.bf16.mxu0 0
          %633 = vmatpush1.bf16.msra.mxu0 0
          %634 = vmatprep.subr.bf16.mxu0 0
          %635 = vmatpush1.bf16.msra.mxu0 0
          %636 = vmatprep.subr.bf16.mxu0 0
          %637 = vmatpush1.bf16.msra.mxu0 0
          %638 = vmatprep.subr.bf16.mxu0 0
          %639 = vmatpush1.bf16.msra.mxu0 0
          %640 = vmatprep.subr.bf16.mxu0 0
          %641 = vmatpush1.bf16.msra.mxu0 0
          %642 = vmatprep.subr.bf16.mxu0 0
          %643 = vmatpush1.bf16.msra.mxu0 0
          %644 = vmatprep.subr.bf16.mxu0 0
          %645 = vmatpush1.bf16.msra.mxu0 0
          %646 = vmatprep.subr.bf16.mxu0 0
          %647 = vmatpush1.bf16.msra.mxu0 0
          %648 = vmatprep.mubr.bf16.mxu0 0
          %649 = vmatmul.mubr.bf16.gmra.mrb[0].mxu0 %v452
          %v650 = vpop.f32.mrb[0].mxu0
          %v651 = vadd.f32 0.0, %v650
          %v652 = vpop.f32.mrb[0].mxu0
          %v653 = vadd.f32 0.0, %v652
          %v654 = vpop.f32.mrb[0].mxu0
          %v655 = vadd.f32 0.0, %v654
          %v656 = vpop.f32.mrb[0].mxu0
          %v657 = vadd.f32 0.0, %v656
          %658 = vmatprep.mubr.bf16.mxu0 0
          %659 = vmatmul.mubr.bf16.gmra.mrb[0].mxu0 %v453
          %v660 = vpop.f32.mrb[0].mxu0
          %v661 = vadd.f32 0.0, %v660
          %v662 = vpop.f32.mrb[0].mxu0
          %v663 = vadd.f32 0.0, %v662
          %v664 = vpop.f32.mrb[0].mxu0
          %v665 = vadd.f32 0.0, %v664
          %v666 = vpop.f32.mrb[0].mxu0
          %v667 = vadd.f32 0.0, %v666
          %668 = vmatprep.mubr.bf16.mxu0 0
          %669 = vmatmul.mubr.bf16.gmra.mrb[0].mxu0 %v454
          %v670 = vpop.f32.mrb[0].mxu0
          %v671 = vadd.f32 0.0, %v670
          %v672 = vpop.f32.mrb[0].mxu0
          %v673 = vadd.f32 0.0, %v672
          %v674 = vpop.f32.mrb[0].mxu0
          %v675 = vadd.f32 0.0, %v674
          %v676 = vpop.f32.mrb[0].mxu0
          %v677 = vadd.f32 0.0, %v676
          %678 = vmatprep.mubr.bf16.mxu0 0
          %679 = vmatmul.mubr.bf16.gmra.mrb[0].mxu0 %v455
          %v680 = vpop.f32.mrb[0].mxu0
          %v681 = vadd.f32 0.0, %v680
          %v682 = vpop.f32.mrb[0].mxu0
          %v683 = vadd.f32 0.0, %v682
          %v684 = vpop.f32.mrb[0].mxu0
          %v685 = vadd.f32 0.0, %v684
          %v686 = vpop.f32.mrb[0].mxu0
          %v687 = vadd.f32 0.0, %v686
          %688 = vdwg.mxu0
          %689 = vmatprep.subr.bf16.mxu0 %v555
          %690 = vmatpush1.bf16.msra.mxu0 %v554
          %691 = vmatprep.subr.bf16.mxu0 %v559
          %692 = vmatpush1.bf16.msra.mxu0 %v558
          %693 = vmatprep.subr.bf16.mxu0 %v563
          %694 = vmatpush1.bf16.msra.mxu0 %v562
          %695 = vmatprep.subr.bf16.mxu0 %v567
          %696 = vmatpush1.bf16.msra.mxu0 %v566
          %697 = vmatprep.subr.bf16.mxu0 %v571
          %698 = vmatpush1.bf16.msra.mxu0 %v570
          %699 = vmatprep.subr.bf16.mxu0 %v575
          %700 = vmatpush1.bf16.msra.mxu0 %v574
          %701 = vmatprep.subr.bf16.mxu0 %v579
          %702 = vmatpush1.bf16.msra.mxu0 %v578
          %703 = vmatprep.subr.bf16.mxu0 %v583
          %704 = vmatpush1.bf16.msra.mxu0 %v582
          %705 = vmatprep.subr.bf16.mxu0 0
          %706 = vmatpush1.bf16.msra.mxu0 0
          %707 = vmatprep.subr.bf16.mxu0 0
          %708 = vmatpush1.bf16.msra.mxu0 0
          %709 = vmatprep.subr.bf16.mxu0 0
          %710 = vmatpush1.bf16.msra.mxu0 0
          %711 = vmatprep.subr.bf16.mxu0 0
          %712 = vmatpush1.bf16.msra.mxu0 0
          %713 = vmatprep.subr.bf16.mxu0 0
          %714 = vmatpush1.bf16.msra.mxu0 0
          %715 = vmatprep.subr.bf16.mxu0 0
          %716 = vmatpush1.bf16.msra.mxu0 0
          %717 = vmatprep.subr.bf16.mxu0 0
          %718 = vmatpush1.bf16.msra.mxu0 0
          %719 = vmatprep.subr.bf16.mxu0 0
          %720 = vmatpush1.bf16.msra.mxu0 0
          %721 = vmatprep.mubr.bf16.mxu0 0
          %722 = vmatmul.mubr.bf16.gmra.mrb[0].mxu0 %v452
          %v723 = vpop.f32.mrb[0].mxu0
          %v724 = vadd.f32 0.0, %v723
          %v725 = vpop.f32.mrb[0].mxu0
          %v726 = vadd.f32 0.0, %v725
          %v727 = vpop.f32.mrb[0].mxu0
          %v728 = vadd.f32 0.0, %v727
          %v729 = vpop.f32.mrb[0].mxu0
          %v730 = vadd.f32 0.0, %v729
          %731 = vmatprep.mubr.bf16.mxu0 0
          %732 = vmatmul.mubr.bf16.gmra.mrb[0].mxu0 %v453
          %v733 = vpop.f32.mrb[0].mxu0
          %v734 = vadd.f32 0.0, %v733
          %v735 = vpop.f32.mrb[0].mxu0
          %v736 = vadd.f32 0.0, %v735
          %v737 = vpop.f32.mrb[0].mxu0
          %v738 = vadd.f32 0.0, %v737
          %v739 = vpop.f32.mrb[0].mxu0
          %v740 = vadd.f32 0.0, %v739
          %741 = vmatprep.mubr.bf16.mxu0 0
          %742 = vmatmul.mubr.bf16.gmra.mrb[0].mxu0 %v454
          %v743 = vpop.f32.mrb[0].mxu0
          %v744 = vadd.f32 0.0, %v743
          %v745 = vpop.f32.mrb[0].mxu0
          %v746 = vadd.f32 0.0, %v745
          %v747 = vpop.f32.mrb[0].mxu0
          %v748 = vadd.f32 0.0, %v747
          %v749 = vpop.f32.mrb[0].mxu0
          %v750 = vadd.f32 0.0, %v749
          %751 = vmatprep.mubr.bf16.mxu0 0
          %752 = vmatmul.mubr.bf16.gmra.mrb[0].mxu0 %v455
          %v753 = vpop.f32.mrb[0].mxu0
          %v754 = vadd.f32 0.0, %v753
          %v755 = vpop.f32.mrb[0].mxu0
          %v756 = vadd.f32 0.0, %v755
          %v757 = vpop.f32.mrb[0].mxu0
          %v758 = vadd.f32 0.0, %v757
          %v759 = vpop.f32.mrb[0].mxu0
          %v760 = vadd.f32 0.0, %v759
          %761 = vdwg.mxu0
          %v762 = vadd.f32 %v420, %v651
          %v763 = vadd.f32 %v421, %v653
          %v764 = vadd.f32 %v422, %v724
          %v765 = vadd.f32 %v423, %v726
          %v766 = vadd.f32 %v424, %v655
          %v767 = vadd.f32 %v425, %v657
          %v768 = vadd.f32 %v426, %v728
          %v769 = vadd.f32 %v427, %v730
          %v770 = vadd.f32 %v428, %v661
          %v771 = vadd.f32 %v429, %v663
          %v772 = vadd.f32 %v430, %v734
          %v773 = vadd.f32 %v431, %v736
          %v774 = vadd.f32 %v432, %v665
          %v775 = vadd.f32 %v433, %v667
          %v776 = vadd.f32 %v434, %v738
          %v777 = vadd.f32 %v435, %v740
          %v778 = vadd.f32 %v436, %v671
          %v779 = vadd.f32 %v437, %v673
          %v780 = vadd.f32 %v438, %v744
          %v781 = vadd.f32 %v439, %v746
          %v782 = vadd.f32 %v440, %v675
          %v783 = vadd.f32 %v441, %v677
          %v784 = vadd.f32 %v442, %v748
          %v785 = vadd.f32 %v443, %v750
          %v786 = vadd.f32 %v444, %v681
          %v787 = vadd.f32 %v445, %v683
          %v788 = vadd.f32 %v446, %v754
          %v789 = vadd.f32 %v447, %v756
          %v790 = vadd.f32 %v448, %v685
          %v791 = vadd.f32 %v449, %v687
          %v792 = vadd.f32 %v450, %v758
          %v793 = vadd.f32 %v451, %v760
          %v794 = vxor.u32 %v762, 2147483648
          %v795 = vxor.u32 %v766, 2147483648
          %v796 = vxor.u32 %v770, 2147483648
          %v797 = vxor.u32 %v774, 2147483648
          %v798 = vxor.u32 %v778, 2147483648
          %v799 = vxor.u32 %v782, 2147483648
          %v800 = vxor.u32 %v786, 2147483648
          %v801 = vxor.u32 %v790, 2147483648
          %v802 = vmul.f32 %v794, 1.442695
          %v803 = vpow.pop %v802
          %v804 = vmul.f32 %v795, 1.442695
          %v805 = vpow.pop %v804
          %v806 = vmul.f32 %v796, 1.442695
          %v807 = vpow.pop %v806
          %v808 = vmul.f32 %v797, 1.442695
          %v809 = vpow.pop %v808
          %v810 = vmul.f32 %v798, 1.442695
          %v811 = vpow.pop %v810
          %v812 = vmul.f32 %v799, 1.442695
          %v813 = vpow.pop %v812
          %v814 = vmul.f32 %v800, 1.442695
          %v815 = vpow.pop %v814
          %v816 = vmul.f32 %v801, 1.442695
          %v817 = vpow.pop %v816
          %v818 = vadd.f32 %v803, 1.0
          %v819 = vadd.f32 %v805, 1.0
          %v820 = vadd.f32 %v807, 1.0
          %v821 = vadd.f32 %v809, 1.0
          %v822 = vadd.f32 %v811, 1.0
          %v823 = vadd.f32 %v813, 1.0
          %v824 = vadd.f32 %v815, 1.0
          %v825 = vadd.f32 %v817, 1.0
          %v826 = vrcp.pop %v818
          %v827 = vmul.f32 1.0, %v826
          %v828 = vrcp.pop %v819
          %v829 = vmul.f32 1.0, %v828
          %v830 = vrcp.pop %v820
          %v831 = vmul.f32 1.0, %v830
          %v832 = vrcp.pop %v821
          %v833 = vmul.f32 1.0, %v832
          %v834 = vrcp.pop %v822
          %v835 = vmul.f32 1.0, %v834
          %v836 = vrcp.pop %v823
          %v837 = vmul.f32 1.0, %v836
          %v838 = vrcp.pop %v824
          %v839 = vmul.f32 1.0, %v838
          %v840 = vrcp.pop %v825
          %v841 = vmul.f32 1.0, %v840
          %v842 = vxor.u32 %v763, 2147483648
          %v843 = vxor.u32 %v767, 2147483648
          %v844 = vxor.u32 %v771, 2147483648
          %v845 = vxor.u32 %v775, 2147483648
          %v846 = vxor.u32 %v779, 2147483648
          %v847 = vxor.u32 %v783, 2147483648
          %v848 = vxor.u32 %v787, 2147483648
          %v849 = vxor.u32 %v791, 2147483648
          %v850 = vmul.f32 %v842, 1.442695
          %v851 = vpow.pop %v850
          %v852 = vmul.f32 %v843, 1.442695
          %v853 = vpow.pop %v852
          %v854 = vmul.f32 %v844, 1.442695
          %v855 = vpow.pop %v854
          %v856 = vmul.f32 %v845, 1.442695
          %v857 = vpow.pop %v856
          %v858 = vmul.f32 %v846, 1.442695
          %v859 = vpow.pop %v858
          %v860 = vmul.f32 %v847, 1.442695
          %v861 = vpow.pop %v860
          %v862 = vmul.f32 %v848, 1.442695
          %v863 = vpow.pop %v862
          %v864 = vmul.f32 %v849, 1.442695
          %v865 = vpow.pop %v864
          %v866 = vadd.f32 %v851, 1.0
          %v867 = vadd.f32 %v853, 1.0
          %v868 = vadd.f32 %v855, 1.0
          %v869 = vadd.f32 %v857, 1.0
          %v870 = vadd.f32 %v859, 1.0
          %v871 = vadd.f32 %v861, 1.0
          %v872 = vadd.f32 %v863, 1.0
          %v873 = vadd.f32 %v865, 1.0
          %v874 = vrcp.pop %v866
          %v875 = vmul.f32 1.0, %v874
          %v876 = vrcp.pop %v867
          %v877 = vmul.f32 1.0, %v876
          %v878 = vrcp.pop %v868
          %v879 = vmul.f32 1.0, %v878
          %v880 = vrcp.pop %v869
          %v881 = vmul.f32 1.0, %v880
          %v882 = vrcp.pop %v870
          %v883 = vmul.f32 1.0, %v882
          %v884 = vrcp.pop %v871
          %v885 = vmul.f32 1.0, %v884
          %v886 = vrcp.pop %v872
          %v887 = vmul.f32 1.0, %v886
          %v888 = vrcp.pop %v873
          %v889 = vmul.f32 1.0, %v888
          %v890 = vtanh.pop %v764
          %v891 = vtanh.pop %v768
          %v892 = vtanh.pop %v772
          %v893 = vtanh.pop %v776
          %v894 = vtanh.pop %v780
          %v895 = vtanh.pop %v784
          %v896 = vtanh.pop %v788
          %v897 = vtanh.pop %v792
          %v898 = vxor.u32 %v765, 2147483648
          %v899 = vxor.u32 %v769, 2147483648
          %v900 = vxor.u32 %v773, 2147483648
          %v901 = vxor.u32 %v777, 2147483648
          %v902 = vxor.u32 %v781, 2147483648
          %v903 = vxor.u32 %v785, 2147483648
          %v904 = vxor.u32 %v789, 2147483648
          %v905 = vxor.u32 %v793, 2147483648
          %v906 = vmul.f32 %v898, 1.442695
          %v907 = vpow.pop %v906
          %v908 = vmul.f32 %v899, 1.442695
          %v909 = vpow.pop %v908
          %v910 = vmul.f32 %v900, 1.442695
          %v911 = vpow.pop %v910
          %v912 = vmul.f32 %v901, 1.442695
          %v913 = vpow.pop %v912
          %v914 = vmul.f32 %v902, 1.442695
          %v915 = vpow.pop %v914
          %v916 = vmul.f32 %v903, 1.442695
          %v917 = vpow.pop %v916
          %v918 = vmul.f32 %v904, 1.442695
          %v919 = vpow.pop %v918
          %v920 = vmul.f32 %v905, 1.442695
          %v921 = vpow.pop %v920
          %v922 = vadd.f32 %v907, 1.0
          %v923 = vadd.f32 %v909, 1.0
          %v924 = vadd.f32 %v911, 1.0
          %v925 = vadd.f32 %v913, 1.0
          %v926 = vadd.f32 %v915, 1.0
          %v927 = vadd.f32 %v917, 1.0
          %v928 = vadd.f32 %v919, 1.0
          %v929 = vadd.f32 %v921, 1.0
          %v930 = vrcp.pop %v922
          %v931 = vmul.f32 1.0, %v930
          %v932 = vrcp.pop %v923
          %v933 = vmul.f32 1.0, %v932
          %v934 = vrcp.pop %v924
          %v935 = vmul.f32 1.0, %v934
          %v936 = vrcp.pop %v925
          %v937 = vmul.f32 1.0, %v936
          %v938 = vrcp.pop %v926
          %v939 = vmul.f32 1.0, %v938
          %v940 = vrcp.pop %v927
          %v941 = vmul.f32 1.0, %v940
          %v942 = vrcp.pop %v928
          %v943 = vmul.f32 1.0, %v942
          %v944 = vrcp.pop %v929
          %v945 = vmul.f32 1.0, %v944
          %v946 = vmul.f32 %v875, %v393
          %v947 = vmul.f32 %v877, %v394
          %v948 = vmul.f32 %v879, %v395
          %v949 = vmul.f32 %v881, %v396
          %v950 = vmul.f32 %v883, %v397
          %v951 = vmul.f32 %v885, %v398
          %v952 = vmul.f32 %v887, %v399
          %v953 = vmul.f32 %v889, %v400
          %v954 = vmul.f32 %v827, %v890
          %v955 = vmul.f32 %v829, %v891
          %v956 = vmul.f32 %v831, %v892
          %v957 = vmul.f32 %v833, %v893
          %v958 = vmul.f32 %v835, %v894
          %v959 = vmul.f32 %v837, %v895
          %v960 = vmul.f32 %v839, %v896
          %v961 = vmul.f32 %v841, %v897
          %v962 = vadd.f32 %v946, %v954
          %v963 = vadd.f32 %v947, %v955
          %v964 = vadd.f32 %v948, %v956
          %v965 = vadd.f32 %v949, %v957
          %v966 = vadd.f32 %v950, %v958
          %v967 = vadd.f32 %v951, %v959
          %v968 = vadd.f32 %v952, %v960
          %v969 = vadd.f32 %v953, %v961
          %v970 = vtanh.pop %v962
          %v971 = vtanh.pop %v963
          %v972 = vtanh.pop %v964
          %v973 = vtanh.pop %v965
          %v974 = vtanh.pop %v966
          %v975 = vtanh.pop %v967
          %v976 = vtanh.pop %v968
          %v977 = vtanh.pop %v969
          %v978 = vmul.f32 %v931, %v970
          %v979 = vmul.f32 %v933, %v971
          %v980 = vmul.f32 %v935, %v972
          %v981 = vmul.f32 %v937, %v973
          %v982 = vmul.f32 %v939, %v974
          %v983 = vmul.f32 %v941, %v975
          %v984 = vmul.f32 %v943, %v976
          %v985 = vmul.f32 %v945, %v977
          %v986 = vstv %s380
          %vm987 = vcmp.lt.s32.totalorder %v986, %v322
          %vm988 = vcmp.lt.s32.totalorder %v986, %v323
          %vm989 = vcmp.lt.s32.totalorder %v986, %v324
          %vm990 = vcmp.lt.s32.totalorder %v986, %v325
          %vm991 = vcmp.lt.s32.totalorder %v986, %v326
          %vm992 = vcmp.lt.s32.totalorder %v986, %v327
          %vm993 = vcmp.lt.s32.totalorder %v986, %v328
          %vm994 = vcmp.lt.s32.totalorder %v986, %v329
          %v995 = vsel %vm987, 1, 0
          %v996 = vsel %vm988, 1, 0
          %v997 = vsel %vm989, 1, 0
          %v998 = vsel %vm990, 1, 0
          %v999 = vsel %vm991, 1, 0
          %v1000 = vsel %vm992, 1, 0
          %v1001 = vsel %vm993, 1, 0
          %v1002 = vsel %vm994, 1, 0
          %1003 = vset.pattern.permute.xlu0 0
          %1004 = vperm.xlu0 %1003, %v995
          %v1005 = vpop.permute.xlu0 %1004
          %1006 = vset.pattern.permute.xlu0 0
          %1007 = vperm.xlu0 %1006, %v996
          %v1008 = vpop.permute.xlu0 %1007
          %1009 = vset.pattern.permute.xlu0 0
          %1010 = vperm.xlu0 %1009, %v997
          %v1011 = vpop.permute.xlu0 %1010
          %1012 = vset.pattern.permute.xlu0 0
          %1013 = vperm.xlu0 %1012, %v998
          %v1014 = vpop.permute.xlu0 %1013
          %1015 = vset.pattern.permute.xlu0 0
          %1016 = vperm.xlu0 %1015, %v999
          %v1017 = vpop.permute.xlu0 %1016
          %1018 = vset.pattern.permute.xlu0 0
          %1019 = vperm.xlu0 %1018, %v1000
          %v1020 = vpop.permute.xlu0 %1019
          %1021 = vset.pattern.permute.xlu0 0
          %1022 = vperm.xlu0 %1021, %v1001
          %v1023 = vpop.permute.xlu0 %1022
          %1024 = vset.pattern.permute.xlu0 0
          %1025 = vperm.xlu0 %1024, %v1002
          %v1026 = vpop.permute.xlu0 %1025
          %vm1027 = vcmp.eq.s32.totalorder %v1005, 1
          %vm1028 = vcmp.eq.s32.totalorder %v1008, 1
          %vm1029 = vcmp.eq.s32.totalorder %v1011, 1
          %vm1030 = vcmp.eq.s32.totalorder %v1014, 1
          %vm1031 = vcmp.eq.s32.totalorder %v1017, 1
          %vm1032 = vcmp.eq.s32.totalorder %v1020, 1
          %vm1033 = vcmp.eq.s32.totalorder %v1023, 1
          %vm1034 = vcmp.eq.s32.totalorder %v1026, 1
          %v1035 = vsel %vm1027, %v978, %v385
          %v1036 = vsel %vm1028, %v979, %v386
          %v1037 = vsel %vm1029, %v980, %v387
          %v1038 = vsel %vm1030, %v981, %v388
          %v1039 = vsel %vm1031, %v982, %v389
          %v1040 = vsel %vm1032, %v983, %v390
          %v1041 = vsel %vm1033, %v984, %v391
          %v1042 = vsel %vm1034, %v985, %v392
          %1043 = vst [vmem:[#allocation2] sm:$0xff] %v1035
          %1044 = vst [vmem:[#allocation2 + $0x8] sm:$0xff] %v1036
          %1045 = vst [vmem:[#allocation2 + $0x10] sm:$0xff] %v1037
          %1046 = vst [vmem:[#allocation2 + $0x18] sm:$0xff] %v1038
          %1047 = vst [vmem:[#allocation2 + $0x20] sm:$0xff] %v1039
          %1048 = vst [vmem:[#allocation2 + $0x28] sm:$0xff] %v1040
          %1049 = vst [vmem:[#allocation2 + $0x30] sm:$0xff] %v1041
          %1050 = vst [vmem:[#allocation2 + $0x38] sm:$0xff] %v1042
          %v1051 = vsel %vm1027, %v962, %v393
          %v1052 = vsel %vm1028, %v963, %v394
          %v1053 = vsel %vm1029, %v964, %v395
          %v1054 = vsel %vm1030, %v965, %v396
          %v1055 = vsel %vm1031, %v966, %v397
          %v1056 = vsel %vm1032, %v967, %v398
          %v1057 = vsel %vm1033, %v968, %v399
          %v1058 = vsel %vm1034, %v969, %v400
          %1059 = vst [vmem:[#allocation3] sm:$0xff] %v1051
          %1060 = vst [vmem:[#allocation3 + $0x8] sm:$0xff] %v1052
          %1061 = vst [vmem:[#allocation3 + $0x10] sm:$0xff] %v1053
          %1062 = vst [vmem:[#allocation3 + $0x18] sm:$0xff] %v1054
          %1063 = vst [vmem:[#allocation3 + $0x20] sm:$0xff] %v1055
          %1064 = vst [vmem:[#allocation3 + $0x28] sm:$0xff] %v1056
          %1065 = vst [vmem:[#allocation3 + $0x30] sm:$0xff] %v1057
          %1066 = vst [vmem:[#allocation3 + $0x38] sm:$0xff] %v1058
        $region53: #{tpu_custom_call.1} parent=35 // loop_footer
          %s382 = sadd.s32 %s380, 1
        $region54: #{tpu_custom_call.1} parent=35 // loop_footer_branch
          %379 = sbr.rel target = $region50
        $region55: #{tpu_custom_call.1} parent=35 // loop_exit
          _
        %v1067 = vld [vmem:[#allocation2] sm:$0xff]
        %v1068 = vld [vmem:[#allocation2 + $0x8] sm:$0xff]
        %v1069 = vld [vmem:[#allocation2 + $0x10] sm:$0xff]
        %v1070 = vld [vmem:[#allocation2 + $0x18] sm:$0xff]
        %v1071 = vld [vmem:[#allocation2 + $0x20] sm:$0xff]
        %v1072 = vld [vmem:[#allocation2 + $0x28] sm:$0xff]
        %v1073 = vld [vmem:[#allocation2 + $0x30] sm:$0xff]
        %v1074 = vld [vmem:[#allocation2 + $0x38] sm:$0xff]
        %v1075 = vld [vmem:[%s272] sm:$0xff]
        %v1077 = vcombine.high %v1075, %v1075
        %v1079 = vunpack.c.l.s4 1966171168
        %v1080 = vunpack.c.0.s8 %v1079
        %v1081 = vlaneseq
        %v1082 = vshrl.u32 %v1081, 7
        %v1083 = vsub.s32 %v1080, %v1082
        %v1084 = vrot.slane %v1075, %v1083
        %v1086 = vunpack.c.l.s4 1966171168
        %v1087 = vunpack.c.0.s8 %v1086
        %v1088 = vlaneseq
        %v1089 = vshrl.u32 %v1088, 7
        %v1090 = vsub.s32 %v1087, %v1089
        %v1091 = vrot.slane %v1077, %v1090
        %v1092 = vcombine.high %v1084, %v1084
        %v1093 = vcombine.high %v1091, %v1091
        %v1095 = vunpack.c.l.s4 1966171168
        %v1096 = vunpack.c.0.s8 %v1095
        %v1097 = vlaneseq
        %v1098 = vshrl.u32 %v1097, 7
        %v1099 = vsub.s32 %v1096, %v1098
        %v1100 = vrot.slane %v1084, %v1099
        %v1102 = vunpack.c.l.s4 1966171168
        %v1103 = vunpack.c.0.s8 %v1102
        %v1104 = vlaneseq
        %v1105 = vshrl.u32 %v1104, 7
        %v1106 = vsub.s32 %v1103, %v1105
        %v1107 = vrot.slane %v1091, %v1106
        %v1109 = vunpack.c.l.s4 1966171168
        %v1110 = vunpack.c.0.s8 %v1109
        %v1111 = vlaneseq
        %v1112 = vshrl.u32 %v1111, 7
        %v1113 = vsub.s32 %v1110, %v1112
        %v1114 = vrot.slane %v1092, %v1113
        %v1116 = vunpack.c.l.s4 1966171168
        %v1117 = vunpack.c.0.s8 %v1116
        %v1118 = vlaneseq
        %v1119 = vshrl.u32 %v1118, 7
        %v1120 = vsub.s32 %v1117, %v1119
        %v1121 = vrot.slane %v1093, %v1120
        %v1122 = vcombine.high %v1100, %v1100
        %v1123 = vcombine.high %v1107, %v1107
        %v1124 = vcombine.high %v1114, %v1114
        %v1125 = vcombine.high %v1121, %v1121
        %v1126 = vlaneseq
        %v1127 = vshrl.u32 %v1126, 7
        %v1128 = vsub.s32 0, %v1127
        %v1129 = vrot.slane %v1100, %v1128
        %v1130 = vlaneseq
        %v1131 = vshrl.u32 %v1130, 7
        %v1132 = vsub.s32 0, %v1131
        %v1133 = vrot.slane %v1114, %v1132
        %v1134 = vlaneseq
        %v1135 = vshrl.u32 %v1134, 7
        %v1136 = vsub.s32 0, %v1135
        %v1137 = vrot.slane %v1122, %v1136
        %v1138 = vlaneseq
        %v1139 = vshrl.u32 %v1138, 7
        %v1140 = vsub.s32 0, %v1139
        %v1141 = vrot.slane %v1124, %v1140
        %v1142 = vlaneseq
        %v1143 = vshrl.u32 %v1142, 7
        %v1144 = vsub.s32 0, %v1143
        %v1145 = vrot.slane %v1107, %v1144
        %v1146 = vlaneseq
        %v1147 = vshrl.u32 %v1146, 7
        %v1148 = vsub.s32 0, %v1147
        %v1149 = vrot.slane %v1121, %v1148
        %v1150 = vlaneseq
        %v1151 = vshrl.u32 %v1150, 7
        %v1152 = vsub.s32 0, %v1151
        %v1153 = vrot.slane %v1123, %v1152
        %v1154 = vlaneseq
        %v1155 = vshrl.u32 %v1154, 7
        %v1156 = vsub.s32 0, %v1155
        %v1157 = vrot.slane %v1125, %v1156
        %v1166 = vmul.f32 %v1067, %v1129
        %v1167 = vmul.f32 %v1068, %v1133
        %v1168 = vmul.f32 %v1069, %v1137
        %v1169 = vmul.f32 %v1070, %v1141
        %v1170 = vmul.f32 %v1071, %v1145
        %v1171 = vmul.f32 %v1072, %v1149
        %v1172 = vmul.f32 %v1073, %v1153
        %v1173 = vmul.f32 %v1074, %v1157
        %1174 = vadd.xlane.f32.xlu0 %v1166
        %v1175 = vpop.xlane.xlu0 %1174
        %1176 = vadd.xlane.f32.xlu0 %v1167
        %v1177 = vpop.xlane.xlu0 %1176
        %1178 = vadd.xlane.f32.xlu0 %v1168
        %v1179 = vpop.xlane.xlu0 %1178
        %1180 = vadd.xlane.f32.xlu0 %v1169
        %v1181 = vpop.xlane.xlu0 %1180
        %1182 = vadd.xlane.f32.xlu0 %v1170
        %v1183 = vpop.xlane.xlu0 %1182
        %1184 = vadd.xlane.f32.xlu0 %v1171
        %v1185 = vpop.xlane.xlu0 %1184
        %1186 = vadd.xlane.f32.xlu0 %v1172
        %v1187 = vpop.xlane.xlu0 %1186
        %1188 = vadd.xlane.f32.xlu0 %v1173
        %v1189 = vpop.xlane.xlu0 %1188
        %v1198 = vlaneseq
        %v1199 = vand.u32 %v1198, 127
        %v1200 = vlaneseq
        %v1201 = vshrl.u32 %v1200, 7
        %v1202 = vsub.s32 %v1199, %v1201
        %v1203 = vrot.slane %v1175, %v1202
        %v1204 = vlaneseq
        %v1205 = vshrl.u32 %v1204, 7
        %v1206 = vsub.s32 %v1199, %v1205
        %v1207 = vrot.slane %v1177, %v1206
        %v1208 = vlaneseq
        %v1209 = vshrl.u32 %v1208, 7
        %v1210 = vsub.s32 %v1199, %v1209
        %v1211 = vrot.slane %v1179, %v1210
        %v1212 = vlaneseq
        %v1213 = vshrl.u32 %v1212, 7
        %v1214 = vsub.s32 %v1199, %v1213
        %v1215 = vrot.slane %v1181, %v1214
        %v1216 = vlaneseq
        %v1217 = vshrl.u32 %v1216, 7
        %v1218 = vsub.s32 %v1199, %v1217
        %v1219 = vrot.slane %v1183, %v1218
        %v1220 = vlaneseq
        %v1221 = vshrl.u32 %v1220, 7
        %v1222 = vsub.s32 %v1199, %v1221
        %v1223 = vrot.slane %v1185, %v1222
        %v1224 = vlaneseq
        %v1225 = vshrl.u32 %v1224, 7
        %v1226 = vsub.s32 %v1199, %v1225
        %v1227 = vrot.slane %v1187, %v1226
        %v1228 = vlaneseq
        %v1229 = vshrl.u32 %v1228, 7
        %v1230 = vsub.s32 %v1199, %v1229
        %v1231 = vrot.slane %v1189, %v1230
        %vm1232 = vcmask 1041409
        %v1233 = vsel %vm1232, %v1207, %v1203
        %vm1234 = vcmask 1042434
        %v1235 = vsel %vm1234, %v1211, %v1233
        %vm1236 = vcmask 1043459
        %v1237 = vsel %vm1236, %v1215, %v1235
        %vm1238 = vcmask 1044484
        %v1239 = vsel %vm1238, %v1219, %v1237
        %vm1240 = vcmask 1045509
        %v1241 = vsel %vm1240, %v1223, %v1239
        %vm1242 = vcmask 1046534
        %v1243 = vsel %vm1242, %v1227, %v1241
        %vm1244 = vcmask 1047559
        %v1245 = vsel %vm1244, %v1231, %v1243
        %vm1247 = vcmask 64512
        %1248 = vst.msk [vmem:[%s320] sm:$0xff] %vm1247, %v1245
        %p1249 = scmp.lt.s32.totalorder %s26, 1
        %s1250 = scalar_select %p1249, %s26, 1
        %s1251 = smul.addr %s1250, 8
        %s1252 = scalar_lea.vmem %s5, %s1251
        // Predicated region
        $region56: #{tpu_custom_call.1} parent=35 // pred_check
          %p1253 = pneg %p143
        $region57: #{tpu_custom_call.1} parent=35 // pred_check_branch
          %1255 = sbr.rel (%p1253) target = $region59
        $region58: #{tpu_custom_call.1} parent=35 // pred_region
          _
        $region59: #{tpu_custom_call.1} parent=35 // pred_fallthru
          _
      $region36: #{tpu_custom_call.1} parent=5 // pred_fallthru
        _
      %p1256 = scmp.le.s32.totalorder 2, %s21
      // Predicated region
      $region60: #{tpu_custom_call.1} parent=5 // pred_check
        %p1257 = pneg %p1256
      $region61: #{tpu_custom_call.1} parent=5 // pred_check_branch
        %1259 = sbr.rel (%p1257) target = $region63
      $region62: #{tpu_custom_call.1} parent=5 // pred_region
        %s1260 = ssub.s32 %s21, 2
        // Predicated region
        $region64: #{tpu_custom_call.1} parent=62 // pred_check
          %p1261 = pneg %p149
        $region65: #{tpu_custom_call.1} parent=62 // pred_check_branch
          %1263 = sbr.rel (%p1261) target = $region67
        $region66: #{tpu_custom_call.1} parent=62 // pred_region
          %p1264 = scmp.lt.s32.totalorder %s27, 1
          %s1265 = scalar_select %p1264, %s27, 1
          %s1266 = smul.addr %s1265, 8
          %s1267 = scalar_lea.vmem %s5, %s1266
        $region67: #{tpu_custom_call.1} parent=62 // pred_fallthru
          _
      $region63: #{tpu_custom_call.1} parent=5 // pred_fallthru
        _
    $region6: #{tpu_custom_call.1} parent=1 // loop_footer
      %s25 = sadd.s32 1, %s21
    $region7: #{tpu_custom_call.1} parent=1 // loop_footer_branch
      %20 = sbr.rel target = $region3
    $region8: #{tpu_custom_call.1} parent=1 // loop_exit
      _
    %1268 = vsyncpa [#allocation7], 1
    %s1269 = scalar_lea.sflag [#allocation7], 1
    %1270 = vsyncpa %s1269, 1
    %1271 = vsyncpa [#allocation9], 1
    %s1272 = scalar_lea.sflag [#allocation9], 1
    %1273 = vsyncpa %s1272, 1

</llo_original>
